<compile_context>
chip_gen: v7x
topology: tpu7x:2x2x1
jax: 0.10.0
libtpu: 0.0.40
codegen_flags: <defaults>
</compile_context>

<pallas_src>
import functools

import jax
import jax.numpy as jnp
from jax.experimental import pallas as pl
from jax.experimental.pallas import tpu as pltpu

_LANE = 128
_SUBLANE = 8
_FALLBACK_BYTES = 64 * 1024          # below this, fused XLA is strictly faster


def _round_up(x: int, m: int) -> int:
    return (x + m - 1) // m * m


def _cdiv(a: int, b: int) -> int:
    return (a + b - 1) // b


def _vmem_capacity_bytes() -> int:
    try:
        return int(pltpu.get_tpu_info().vmem_capacity_bytes)
    except Exception:                 # conservative fallback (v7x-sized)
        return 64 * 1024 * 1024


def _num_tensorcores() -> int:
    """Best-effort TensorCore count for megacore gating; defaults to 1."""
    try:
        info = pltpu.get_tpu_info()
        for attr in ("num_cores", "core_count", "num_tensorcores",
                     "tensorcore_count", "cores_per_chip"):
            v = getattr(info, attr, None)
            if v:
                return int(v)
    except Exception:
        pass
    try:
        dev = jax.local_devices()[0]
        for attr in ("num_cores", "core_count"):
            v = getattr(dev, attr, None)
            if v:
                return int(v)
    except Exception:
        pass
    return 1


def _pick_loss_kernel(logits_ref, tgt_ref, part_ref, *, n_true, samples_axis):
    """One tile of samples: accumulate sum_i [lse_i - logits[i, tgt_i]].

    samples_axis == 1: logits block is [C, T]  (lane-dense path, C < 128)
    samples_axis == 0: logits block is [T, C]  (row-tiled path,  C >= 128)
    """
    k = pl.program_id(1)

    @pl.when(k == 0)
    def _init():
        part_ref[...] = jnp.zeros_like(part_ref)

    x = logits_ref[...].astype(jnp.float32)
    cls_axis = 1 - samples_axis

    # Numerically stable logsumexp over the class axis.
    m = jnp.max(x, axis=cls_axis, keepdims=True)
    lse = jnp.log(jnp.sum(jnp.exp(x - m), axis=cls_axis, keepdims=True)) + m

    # Gather logits[i, target[i]] without dynamic gather: iota + mask + sum.
    cls_idx = jax.lax.broadcasted_iota(jnp.int32, x.shape, cls_axis)
    picked = jnp.sum(jnp.where(cls_idx == tgt_ref[...], x, 0.0),
                     axis=cls_axis, keepdims=True)

    per_sample = lse - picked                       # [1, T] or [T, 1]

    # Mask ragged-tail / out-of-range samples.  Any garbage (even NaN) in
    # the unread part of a partial boundary block is dropped here because
    # jnp.where is a select, not a multiply.
    t = x.shape[samples_axis]
    base = (pl.program_id(0) * pl.num_programs(1) + k) * t
    gidx = jax.lax.broadcasted_iota(jnp.int32, per_sample.shape,
                                    samples_axis) + base
    blk_sum = jnp.sum(jnp.where(gidx < n_true, per_sample, 0.0),
                      keepdims=True)                # (1, 1)

    # Accumulate into the resident per-split (8,128) output block.
    part_ref[...] += jnp.broadcast_to(blk_sum, part_ref.shape)


def pick_loss(logits, targets, *, max_tile_bytes=None, allow_fallback=True):
    """logits: [N, C] float; targets: [N] int. Returns scalar mean CE loss."""
    n, c = logits.shape
    targets = targets.astype(jnp.int32)
    itemsize = jnp.dtype(logits.dtype).itemsize

    # --- tiny problems: fused XLA beats the pallas_call fixed cost --------
    if allow_fallback and n * c * itemsize < _FALLBACK_BYTES:
        x = logits.astype(jnp.float32)
        lse = jax.nn.logsumexp(x, axis=-1)
        picked = jnp.take_along_axis(x, targets[:, None], axis=1)[:, 0]
        return jnp.sum(lse - picked) / jnp.float32(n)

    # --- per-generation VMEM budget ---------------------------------------
    vmem_cap = _vmem_capacity_bytes()          # 128 MiB v5e/v6e, 64 MiB v7x
    vmem_limit = vmem_cap // 2                 # scoped limit we request
    tile_budget = vmem_limit // 8              # f32 bytes of one logits tile
    if max_tile_bytes is not None:             # (leaves room for the double
        tile_budget = min(tile_budget, max_tile_bytes)  # buffer + f32 temps)

    # --- layout: lane-dense compute when the class dim is far below 128 ---
    if c < _LANE:
        samples_axis, align = 1, _LANE         # samples -> lanes
    else:
        samples_axis, align = 0, _SUBLANE      # samples -> sublanes (rows)

    # samples per grid step (biggest aligned tile the budget allows)
    tile = max(align, (tile_budget // (4 * c)) // align * align)
    tile = min(tile, _round_up(n, align))

    # --- split the sample range across TensorCores (v7x megacore only) ----
    n_tiles = _cdiv(n, tile)
    num_splits = 2 if (_num_tensorcores() >= 2 and n_tiles >= 4) else 1
    steps = _cdiv(n_tiles, num_splits)
    grid = (num_splits, steps)
    last_blk = n_tiles - 1                     # clamp OOB steps to this block

    # --- BlockSpecs on the unpadded inputs ---------------------------------
    if samples_axis == 1:
        lg = jnp.transpose(logits)             # [C, N]  (no pad copy)
        tg = targets[None, :]                  # [1, N]  lane-dense targets
        lg_spec = pl.BlockSpec(
            (c, tile), lambda p, k: (0, jnp.minimum(p * steps + k, last_blk)))
        tg_spec = pl.BlockSpec(
            (1, tile), lambda p, k: (0, jnp.minimum(p * steps + k, last_blk)))
    else:
        lg = logits                            # [N, C]  streamed as-is
        tg = targets[:, None]                  # [N, 1]
        lg_spec = pl.BlockSpec(
            (tile, c), lambda p, k: (jnp.minimum(p * steps + k, last_blk), 0))
        tg_spec = pl.BlockSpec(
            (tile, 1), lambda p, k: (jnp.minimum(p * steps + k, last_blk), 0))

    # one aligned (8, 128) partial-sum block per split
    out_shape = jax.ShapeDtypeStruct((num_splits * _SUBLANE, _LANE),
                                     jnp.float32)
    out_spec = pl.BlockSpec((_SUBLANE, _LANE), lambda p, k: (p, 0))

    kernel = functools.partial(_pick_loss_kernel, n_true=n,
                               samples_axis=samples_axis)

    cost = pl.CostEstimate(
        flops=5 * n * c,
        transcendentals=n * c + n,             # exp per element + log per row
        bytes_accessed=n * c * itemsize + n * 4
        + num_splits * _SUBLANE * _LANE * 4,
    )

    parts = pl.pallas_call(
        kernel,
        out_shape=out_shape,
        grid=grid,
        in_specs=[lg_spec, tg_spec],
        out_specs=out_spec,
        compiler_params=pltpu.CompilerParams(
            dimension_semantics=("parallel", "arbitrary"),
            vmem_limit_bytes=vmem_limit,
        ),
        cost_estimate=cost,
    )(lg, tg)

    # every element of split p's (8,128) block holds that split's partial sum
    total = jnp.sum(parts[::_SUBLANE, 0])
    return total / jnp.float32(n)


def pick_loss_module(out_dict, target_dict):
    """Mirror of PickLoss.forward (the .to(device) is a no-op in JAX)."""
    logits = out_dict["pick"]
    targets = jnp.concatenate(target_dict["action_instance"], axis=0)
    return pick_loss(logits, targets)


if __name__ == "__main__":
    key = jax.random.PRNGKey(0)
    k1, k2, k3, k4, k5 = jax.random.split(key, 5)

    # --- module-shaped example: 8 pick decisions over 16 candidate instances
    N, C = 8, 16
    logits = jax.random.normal(k1, (N, C), dtype=jnp.float32)
    t_a = jax.random.randint(k2, (5,), 0, C, dtype=jnp.int32)
    t_b = jax.random.randint(k3, (3,), 0, C, dtype=jnp.int32)
    out_dict = {"pick": logits}
    target_dict = {"action_instance": [t_a, t_b]}
    tgt = jnp.concatenate([t_a, t_b], axis=0)

    def _ref_loss(lg, tg_):
        return jnp.mean(jax.nn.logsumexp(lg, axis=-1)
                        - lg[jnp.arange(lg.shape[0]), tg_])

    ref = _ref_loss(logits, tgt)

    # Module entry point (tiny shape -> pure-JAX fallback path).
    loss = jax.block_until_ready(pick_loss_module(out_dict, target_dict))
    assert jnp.allclose(loss, ref, rtol=1e-4, atol=1e-4), (loss, ref)

    # Same module shapes, forced through the Pallas kernel.
    loss_pl = jax.block_until_ready(
        pick_loss(logits, tgt, allow_fallback=False))
    assert jnp.allclose(loss_pl, ref, rtol=1e-4, atol=1e-4), (loss_pl, ref)

    # Ragged N, multi-tile accumulation and partial boundary blocks for both
    # layouts (a tiny tile budget forces several grid steps at small shapes).
    for (n2, c2, budget) in [(300, 16, 128 * 16 * 4),     # lane-dense path
                             (300, 256, 64 * 256 * 4)]:   # row-tiled path
        lg2 = jax.random.normal(k4, (n2, c2), dtype=jnp.float32)
        tg2 = jax.random.randint(k5, (n2,), 0, c2, dtype=jnp.int32)
        got = jax.block_until_ready(
            pick_loss(lg2, tg2, max_tile_bytes=budget, allow_fallback=False))
        want = _ref_loss(lg2, tg2)
        assert jnp.allclose(got, want, rtol=1e-4, atol=1e-4), (n2, c2, got, want)

    print("KERNEL_OK")
</pallas_src>

<mosaic_0001>
module attributes {stable_mosaic.version = 11 : i64} {
  func.func @_pick_loss_kernel(%arg0: i32, %arg1: i32, %arg2: memref<16x128xf32, #tpu.memory_space<vmem>>, %arg3: memref<1x128xi32, #tpu.memory_space<vmem>>, %arg4: memref<8x128xf32, #tpu.memory_space<vmem>>) attributes {dimension_semantics = [#tpu.dimension_semantics<parallel>, #tpu.dimension_semantics<arbitrary>], iteration_bounds = array<i64: 1, 1>, scalar_prefetch = 0 : i64, scratch_operands = 0 : i64, tpu.core_type = #tpu.core_type<tc>, window_params = [{transform_indices = @transform_0, window_bounds = array<i64: 16, 128>}, {transform_indices = @transform_1, window_bounds = array<i64: 1, 128>}, {transform_indices = @transform_2, window_bounds = array<i64: 8, 128>}]} {
    %c0_i32 = arith.constant 0 : i32
    %0 = arith.cmpi eq, %arg1, %c0_i32 : i32
    %1 = arith.extui %0 : i1 to i32
    %c0_i32_0 = arith.constant 0 : i32
    %2 = arith.cmpi ne, %1, %c0_i32_0 : i32
    scf.if %2 {
      %cst_13 = arith.constant 0.000000e+00 : f32
      %42 = vector.broadcast %cst_13 : f32 to vector<8x128xf32>
      %c0_14 = arith.constant 0 : index
      %c0_15 = arith.constant 0 : index
      %43 = vector.load %arg4[%c0_14, %c0_15] : memref<8x128xf32, #tpu.memory_space<vmem>>, vector<8x128xf32>
      tpu.vector_store %arg4[%c0_14, %c0_15], %42 {strides = array<i32>} : memref<8x128xf32, #tpu.memory_space<vmem>>, vector<8x128xf32>,
    } else {
    }
    %c0 = arith.constant 0 : index
    %c0_1 = arith.constant 0 : index
    %3 = vector.load %arg2[%c0, %c0_1] : memref<16x128xf32, #tpu.memory_space<vmem>>, vector<16x128xf32>
    %cst = arith.constant dense<0xFF800000> : vector<128xf32>
    %4 = vector.multi_reduction <maximumf>, %3, %cst [0] : vector<16x128xf32> to vector<128xf32>
    %5 = vector.shape_cast %4 : vector<128xf32> to vector<1x128xf32>
    %6 = vector.broadcast %5 : vector<1x128xf32> to vector<16x128xf32>
    %7 = arith.subf %3, %6 : vector<16x128xf32>
    %8 = math.exp %7 : vector<16x128xf32>
    %cst_2 = arith.constant dense<0.000000e+00> : vector<128xf32>
    %9 = vector.multi_reduction <add>, %8, %cst_2 [0] : vector<16x128xf32> to vector<128xf32>
    %10 = vector.shape_cast %9 : vector<128xf32> to vector<1x128xf32>
    %11 = math.log %10 : vector<1x128xf32>
    %12 = arith.addf %11, %5 : vector<1x128xf32>
    %13 = tpu.iota {dimensions = array<i32: 0>} : vector<16x128xi32>
    %c0_3 = arith.constant 0 : index
    %c0_4 = arith.constant 0 : index
    %14 = vector.load %arg3[%c0_3, %c0_4] : memref<1x128xi32, #tpu.memory_space<vmem>>, vector<1x128xi32>
    %15 = vector.broadcast %14 : vector<1x128xi32> to vector<16x128xi32>
    %16 = arith.cmpi eq, %13, %15 : vector<16x128xi32>
    %cst_5 = arith.constant 0.000000e+00 : f32
    %17 = vector.broadcast %cst_5 : f32 to vector<16x128xf32>
    %18 = arith.select %16, %3, %17 : vector<16x128xi1>, vector<16x128xf32>
    %cst_6 = arith.constant dense<0.000000e+00> : vector<128xf32>
    %19 = vector.multi_reduction <add>, %18, %cst_6 [0] : vector<16x128xf32> to vector<128xf32>
    %20 = vector.shape_cast %19 : vector<128xf32> to vector<1x128xf32>
    %21 = arith.subf %12, %20 : vector<1x128xf32>
    %c1_i32 = arith.constant 1 : i32
    %22 = arith.muli %arg0, %c1_i32 : i32
    %23 = arith.addi %22, %arg1 : i32
    %c128_i32 = arith.constant 128 : i32
    %24 = arith.muli %23, %c128_i32 : i32
    %25 = tpu.iota {dimensions = array<i32: 1>} : vector<1x128xi32>
    %26 = vector.broadcast %24 : i32 to vector<1x128xi32>
    %27 = arith.addi %25, %26 : vector<1x128xi32>
    %c8_i32 = arith.constant 8 : i32
    %28 = vector.broadcast %c8_i32 : i32 to vector<1x128xi32>
    %29 = arith.cmpi slt, %27, %28 : vector<1x128xi32>
    %cst_7 = arith.constant 0.000000e+00 : f32
    %30 = vector.broadcast %cst_7 : f32 to vector<1x128xf32>
    %31 = arith.select %29, %21, %30 : vector<1x128xi1>, vector<1x128xf32>
    %32 = vector.shape_cast %31 : vector<1x128xf32> to vector<1x1x128xf32>
    %cst_8 = arith.constant dense<0.000000e+00> : vector<1xf32>
    %33 = vector.multi_reduction <add>, %32, %cst_8 [1, 2] : vector<1x1x128xf32> to vector<1xf32>
    %34 = vector.shape_cast %33 : vector<1xf32> to vector<1x1x1xf32>
    %35 = vector.extract %34[0, 0, 0] : f32 from vector<1x1x1xf32>
    %36 = vector.broadcast %35 : f32 to vector<1x1xf32>
    %c0_9 = arith.constant 0 : index
    %c0_10 = arith.constant 0 : index
    %37 = vector.load %arg4[%c0_9, %c0_10] : memref<8x128xf32, #tpu.memory_space<vmem>>, vector<8x128xf32>
    %38 = vector.shape_cast %36 : vector<1x1xf32> to vector<1x1xf32>
    %39 = vector.broadcast %38 : vector<1x1xf32> to vector<8x128xf32>
    %40 = arith.addf %37, %39 : vector<8x128xf32>
    %c0_11 = arith.constant 0 : index
    %c0_12 = arith.constant 0 : index
    %41 = vector.load %arg4[%c0_11, %c0_12] : memref<8x128xf32, #tpu.memory_space<vmem>>, vector<8x128xf32>
    tpu.vector_store %arg4[%c0_11, %c0_12], %40 {strides = array<i32>} : memref<8x128xf32, #tpu.memory_space<vmem>>, vector<8x128xf32>,
    return
  }
  func.func @transform_0(%arg0: i32, %arg1: i32) -> (i32, i32) {
    %c1_i32 = arith.constant 1 : i32
    %0 = arith.muli %arg0, %c1_i32 : i32
    %1 = arith.addi %0, %arg1 : i32
    %c0_i32 = arith.constant 0 : i32
    %2 = arith.minsi %1, %c0_i32 : i32
    %c0_i32_0 = arith.constant 0 : i32
    %c0_i32_1 = arith.constant 0 : i32
    return %c0_i32_0, %2 : i32, i32
  }
  func.func @transform_1(%arg0: i32, %arg1: i32) -> (i32, i32) {
    %c1_i32 = arith.constant 1 : i32
    %0 = arith.muli %arg0, %c1_i32 : i32
    %1 = arith.addi %0, %arg1 : i32
    %c0_i32 = arith.constant 0 : i32
    %2 = arith.minsi %1, %c0_i32 : i32
    %c0_i32_0 = arith.constant 0 : i32
    %c0_i32_1 = arith.constant 0 : i32
    return %c0_i32_0, %2 : i32, i32
  }
  func.func @transform_2(%arg0: i32, %arg1: i32) -> (i32, i32) {
    %c0_i32 = arith.constant 0 : i32
    %c0_i32_0 = arith.constant 0 : i32
    return %arg0, %c0_i32 : i32, i32
  }
}

</mosaic_0001>

<llo_original>
// kernel: tpu_custom_call.1
$region0: #{tpu_custom_call.1}
  #allocation0 [shape = 'u32[]', space=smem, size = 0x4, offset = 0x4, fixed_abs, tag = 'smem constant byte address 0x4 - core index']
  #allocation1 [shape = 'u32[144,128]{1,0:T(1,128)}', space=vmem, size = 0x12000, scoped, tag = 'internal scratch']
  %s0 = inlined_call_operand.vmem [shape: f32[16,8], index: 0, kind: input, shape index: {}]
  %s1 = inlined_call_operand.vmem [shape: s32[1,8], index: 1, kind: input, shape index: {}]
  %s2 = inlined_call_operand.hbm [shape: f32[8,128], index: 2, kind: output, shape index: {}]
  %s3 = sld [smem:[#allocation0]]
  $region22: #{tpu_custom_call.1} parent=0
    _
  %s5 = ssub.s32 1, %s3
  %s6 = scalar_select 0, %s5, %s3
  $region1: #{tpu_custom_call.1} parent=0
    #allocation2 [shape = 'u8[4096]{0}', space=vmem, size = 0x1000, scoped, tag = 'output window, operand 0, single buffered']
    #allocation3 [shape = 's32[1]{0}', space=sflag, size = 0x4, scoped, tag = 'scoped memory for tpu_custom_call.1']
    %7 = vsyncpa [#allocation3], 0
    // Predicated region
    $region2: #{tpu_custom_call.1} parent=1 // pred_check
      _
    $region3: #{tpu_custom_call.1} parent=1 // pred_check_branch
      %9 = sbr.rel (0) target = $region5
    $region4: #{tpu_custom_call.1} parent=1 // pred_region
      %s10 = sadd.s32 0, 0
      %p11 = scmp.lt.s32.totalorder %s10, 0
      %s12 = scalar_select %p11, %s10, 0
      %p13 = scmp.lt.s32.totalorder %s12, 0
      %s14 = scalar_select %p13, %s12, 0
      %s15 = smul.addr %s14, 8
      %s16 = scalar_lea.vmem %s0, %s15
      %s17 = sadd.s32 0, 0
      %p18 = scmp.lt.s32.totalorder %s17, 0
      %s19 = scalar_select %p18, %s17, 0
    $region5: #{tpu_custom_call.1} parent=1 // pred_fallthru
      _
    // Predicated region
    $region6: #{tpu_custom_call.1} parent=1 // pred_check
      _
    $region7: #{tpu_custom_call.1} parent=1 // pred_check_branch
      %21 = sbr.rel (0) target = $region9
    $region8: #{tpu_custom_call.1} parent=1 // pred_region
      %s22 = sadd.s32 0, 0
      %p23 = scmp.lt.s32.totalorder %s22, 0
      %s24 = scalar_select %p23, %s22, 0
      %p25 = scmp.lt.s32.totalorder %s24, 0
      %s26 = scalar_select %p25, %s24, 0
      %s27 = scalar_lea.vmem %s1, %s26
      %s28 = sadd.s32 0, 0
      %p29 = scmp.lt.s32.totalorder %s28, 0
      %s30 = scalar_select %p29, %s28, 0
    $region9: #{tpu_custom_call.1} parent=1 // pred_fallthru
      _
    %s31 = sadd.s32 0, 0
    %p32 = scmp.lt.s32.totalorder %s31, 0
    %s33 = scalar_select %p32, %s31, 0
    %p34 = scmp.lt.s32.totalorder %s33, 0
    %s35 = scalar_select %p34, %s33, 0
    %s36 = smul.addr %s35, 8
    %s37 = scalar_lea.vmem %s0, %s36
    %s38 = sadd.s32 0, 0
    %p39 = scmp.lt.s32.totalorder %s38, 0
    %s40 = scalar_select %p39, %s38, 0
    %p41 = scmp.lt.s32.totalorder %s40, 0
    %s42 = scalar_select %p41, %s40, 0
    %s43 = scalar_lea.vmem %s1, %s42
    %s44 = sadd.s32 0, 0
    %p45 = scmp.lt.s32.totalorder %s44, 0
    %s46 = scalar_select %p45, %s44, 0
    %p47 = scmp.lt.s32.totalorder %s46, 0
    %s48 = scalar_select %p47, %s46, 0
    %s49 = smul.addr %s48, 8
    %s50 = scalar_lea.vmem %s0, %s49
    %s51 = sadd.s32 0, 0
    %p52 = scmp.lt.s32.totalorder %s51, 0
    %s53 = scalar_select %p52, %s51, 0
    %s54 = sadd.s32 0, 0
    %p55 = scmp.lt.s32.totalorder %s54, 0
    %s56 = scalar_select %p55, %s54, 0
    %p57 = scmp.lt.s32.totalorder %s56, 0
    %s58 = scalar_select %p57, %s56, 0
    %s59 = scalar_lea.vmem %s1, %s58
    %s60 = sadd.s32 0, 0
    %p61 = scmp.lt.s32.totalorder %s60, 0
    %s62 = scalar_select %p61, %s60, 0
    %p63 = scmp.eq.s32.totalorder 0, 0
    // Predicated region
    $region10: #{tpu_custom_call.1} parent=1 // pred_check
      %p64 = pneg %p63
    $region11: #{tpu_custom_call.1} parent=1 // pred_check_branch
      %66 = sbr.rel (%p64) target = $region13
    $region12: #{tpu_custom_call.1} parent=1 // pred_region
      %67 = vst [vmem:[#allocation2] sm:$0xff] 0.0
    $region13: #{tpu_custom_call.1} parent=1 // pred_fallthru
      _
    %v68 = vld [vmem:[%s50] sm:$0xff]
    %v69 = vld [vmem:[%s50 + $0x8] sm:$0xff]
    %v70 = vmax.f32 %v68, %v69
    %v71 = vrot.slane %v70, 4
    %v72 = vmax.f32 %v70, %v71
    %v73 = vrot.slane %v72, 2
    %v74 = vmax.f32 %v72, %v73
    %v75 = vrot.slane %v74, 1
    %v76 = vmax.f32 %v74, %v75
    %v77 = vsub.f32 %v68, %v76
    %v78 = vsub.f32 %v69, %v76
    %v79 = vmul.f32 %v77, 1.442695
    %v80 = vpow.pop %v79
    %v81 = vmul.f32 %v78, 1.442695
    %v82 = vpow.pop %v81
    %v83 = vadd.f32 %v80, %v82
    %v84 = vrot.slane %v83, 4
    %v85 = vadd.f32 %v83, %v84
    %v86 = vrot.slane %v85, 2
    %v87 = vadd.f32 %v85, %v86
    %v88 = vrot.slane %v87, 1
    %v89 = vadd.f32 %v87, %v88
    %v90 = vlog2.pop %v89
    %v91 = vmul.f32 %v90, 0.6931472
    %v92 = vadd.f32 %v91, %v76
    %v93 = vlaneseq
    %v94 = vshrl.u32 %v93, 7
    %v95 = vadd.s32 %v94, 8
    %v96 = vld [vmem:[%s59] sm:$0x1]
    %v97 = vlaneseq
    %v98 = vshrl.u32 %v97, 7
    %v99 = vsub.s32 0, %v98
    %v100 = vrot.slane %v96, %v99
    %vm101 = vcmp.eq.s32.totalorder %v94, %v100
    %vm102 = vcmp.eq.s32.totalorder %v95, %v100
    %v103 = vsel %vm101, %v68, 0.0
    %v104 = vsel %vm102, %v69, 0.0
    %v105 = vadd.f32 %v103, %v104
    %v106 = vrot.slane %v105, 4
    %v107 = vadd.f32 %v105, %v106
    %v108 = vrot.slane %v107, 2
    %v109 = vadd.f32 %v107, %v108
    %v110 = vrot.slane %v109, 1
    %v111 = vadd.f32 %v109, %v110
    %v112 = vsub.f32 %v92, %v111
    %s113 = sadd.s32 0, 0
    %s114 = smul.u32 %s113, 128
    %v115 = vlaneseq
    %v116 = vand.u32 %v115, 127
    %v117 = vstv %s114
    %v118 = vadd.s32 %v116, %v117
    %vm119 = vcmp.lt.s32.totalorder %v118, 8
    %v120 = vsel %vm119, %v112, 0.0
    %vm121 = vcmask 1040384
    %v122 = vsel %vm121, %v120, 0.0
    %123 = vadd.xlane.f32.xlu0 %v122
    %v124 = vpop.xlane.xlu0 %123
    %v125 = vrot.slane %v124, 4
    %v126 = vadd.f32 %v124, %v125
    %v127 = vrot.slane %v126, 2
    %v128 = vadd.f32 %v126, %v127
    %v129 = vrot.slane %v128, 1
    %v130 = vadd.f32 %v128, %v129
    %s131 = vtos %v130
    %v132 = vld [vmem:[#allocation2] sm:$0xff]
    %v133 = vstv %s131
    %v134 = vadd.f32 %v132, %v133
    %135 = vst [vmem:[#allocation2] sm:$0xff] %v134
    // Predicated region
    $region14: #{tpu_custom_call.1} parent=1 // pred_check
      _
    $region15: #{tpu_custom_call.1} parent=1 // pred_check_branch
      %137 = sbr.rel (0) target = $region17
    $region16: #{tpu_custom_call.1} parent=1 // pred_region
      %s139 = ssub.s32 128, 128
      %140 = vsyncadd [#allocation3], %s139
      %s142 = sshll.u32 [#allocation2], 4
      %s143 = int_to_ptr.vmem [resolvable:$true] %s142
      %145 = dma.vmem_to_hbm [thread:$0]  %s143, 128, %s2, [#allocation3]
    $region17: #{tpu_custom_call.1} parent=1 // pred_fallthru
      _
    // Predicated region
    $region18: #{tpu_custom_call.1} parent=1 // pred_check
      _
    $region19: #{tpu_custom_call.1} parent=1 // pred_check_branch
      %147 = sbr.rel (0) target = $region21
    $region20: #{tpu_custom_call.1} parent=1 // pred_region
      %148 = dma.done [#allocation3], 128
    $region21: #{tpu_custom_call.1} parent=1 // pred_fallthru
      _
    %149 = vsyncpa [#allocation3], 1

</llo_original>
